<compile_context>
chip_gen: v7x
topology: tpu7x:2x2x1
jax: 0.10.0
libtpu: 0.0.40
codegen_flags: <defaults>
</compile_context>

<pallas_src>
import functools

import jax
import jax.numpy as jnp
from jax.experimental import pallas as pl
from jax.experimental.pallas import tpu as pltpu

# Problem sizes implied by the reference script.
SENTENCES = ["i like dog", "i love coffee", "i hate milk"]
WORD_LIST = sorted(set(" ".join(SENTENCES).split()))  # deterministic order
WORD_DICT = {w: i for i, w in enumerate(WORD_LIST)}
N_CLASS = len(WORD_DICT)          # 7
N_HIDDEN = 5
BATCH = len(SENTENCES)            # 3
SEQ_LEN = 2                       # first two words predict the third

# Hardware tile constants.
LANES = 128                       # vreg lane width
SUB = 8                           # vreg sublane group (batch padded to this)

# Row offsets inside the packed parameter slab (each block 8-row aligned).
W_IH_ROW = 0                      # [n_class, n_hidden] in rows   0:128
W_HH_ROW = LANES                  # [n_hidden, n_hidden] in rows 128:256
W_OUT_ROW = 2 * LANES             # [n_hidden, n_class] in rows 256:384
B_ROW = 3 * LANES                 # combined RNN bias (row 384)
B_OUT_ROW = 3 * LANES + SUB       # output bias (row 392)
PARAM_ROWS = 3 * LANES + 2 * SUB  # 400


def _pad2d(a, rows, cols=LANES):
    r, c = a.shape
    return jnp.pad(a, ((0, rows - r), (0, cols - c)))


def _textrnn_kernel(seq_len, data_ref, params_ref, out_ref):
    """Full forward pass: RNN unrolled over time + linear head.

    data_ref  : [seq_len*8 + 8, 128]  rows 0:seq_len*8 = X (time-major,
                batch padded to 8, lanes zero-padded), last 8 rows = h0.
    params_ref: [400, 128] packed, zero-padded parameters (layout above).
    out_ref   : [8, 128] lane-dense logits (valid region [batch, n_class]).
    """
    # Loop-invariant parameter views / loads, hoisted above the recurrence.
    # All row offsets are multiples of 8 -> sublane-aligned, no lane slicing.
    wih = params_ref[W_IH_ROW:W_IH_ROW + LANES, :]     # [128, 128]
    whh = params_ref[W_HH_ROW:W_HH_ROW + LANES, :]     # [128, 128]
    wout = params_ref[W_OUT_ROW:W_OUT_ROW + LANES, :]  # [128, 128]
    b = params_ref[B_ROW:B_ROW + 1, :]                 # [1, 128]
    bout = params_ref[B_OUT_ROW:B_OUT_ROW + 1, :]      # [1, 128]

    x = data_ref[0:seq_len * SUB, :]                         # [seq_len*8, 128]
    h = data_ref[seq_len * SUB:(seq_len + 1) * SUB, :]       # [8, 128] = h0

    # Input projection for ALL timesteps in one matmul, off the serial chain.
    # Zero padding keeps the extra lanes/rows of p mathematically inert.
    p = jnp.dot(x, wih, preferred_element_type=jnp.float32) + b

    # seq_len is small and static -> unroll; one MXU dot + tanh per step,
    # and the per-step slice of p is an aligned full-sublane-group view.
    for t in range(seq_len):
        h = jnp.tanh(p[t * SUB:(t + 1) * SUB, :]
                     + jnp.dot(h, whh, preferred_element_type=jnp.float32))

    # Linear head; unmasked full-vreg [8, 128] store.
    out_ref[...] = (jnp.dot(h, wout, preferred_element_type=jnp.float32)
                    + bout).astype(out_ref.dtype)


def textrnn_forward(x_tmajor, h0, w_ih, w_hh, b, w_out, b_out):
    """x_tmajor: [seq_len, batch, n_class] f32 one-hot; h0: [batch, n_hidden].

    w_ih: [n_class, n_hidden] (= W_ih^T), w_hh: [n_hidden, n_hidden] (= W_hh^T),
    b: [1, n_hidden] (= b_ih + b_hh), w_out: [n_hidden, n_class] (= W^T),
    b_out: [1, n_class].
    """
    seq_len, batch, n_class = x_tmajor.shape
    n_hidden = h0.shape[1]
    assert batch <= SUB and n_class <= LANES and n_hidden <= LANES

    # --- Host/XLA-side packing (layout plumbing, not compute) -------------
    # One parameter slab: zero-padded so all in-kernel contractions are
    # full-width and padded lanes stay exactly zero through the recurrence.
    params = jnp.concatenate([
        _pad2d(w_ih, LANES),      # rows   0:128
        _pad2d(w_hh, LANES),      # rows 128:256
        _pad2d(w_out, LANES),     # rows 256:384
        _pad2d(b, SUB),           # rows 384:392 (row 384 valid)
        _pad2d(b_out, SUB),       # rows 392:400 (row 392 valid)
    ], axis=0)                                            # [400, 128]

    # One data slab: time-major X with batch padded to 8 sublanes, then h0.
    x_pad = jnp.pad(x_tmajor,
                    ((0, 0), (0, SUB - batch), (0, LANES - n_class)))
    data = jnp.concatenate([x_pad.reshape(seq_len * SUB, LANES),
                            _pad2d(h0, SUB)], axis=0)     # [seq_len*8+8, 128]

    # Advisory cost so XLA schedules around the call sensibly.
    flops = 2 * (seq_len * batch * n_class * n_hidden
                 + seq_len * batch * n_hidden * n_hidden
                 + batch * n_hidden * n_class)
    cost = pl.CostEstimate(
        flops=flops,
        transcendentals=seq_len * batch * n_hidden,
        bytes_accessed=int((params.size + data.size + SUB * LANES) * 4))

    # Tiny problem -> no grid, no pipelining: whole-array VMEM residency.
    vmem = lambda: pl.BlockSpec(memory_space=pltpu.MemorySpace.VMEM)

    out = pl.pallas_call(
        functools.partial(_textrnn_kernel, seq_len),
        out_shape=jax.ShapeDtypeStruct((SUB, LANES), jnp.float32),
        in_specs=[vmem(),   # data slab (X time-major + h0)
                  vmem()],  # packed parameter slab
        out_specs=vmem(),
        cost_estimate=cost,
    )(data, params)

    return out[:batch, :n_class]


def _reference_forward(x_tmajor, h0, w_ih, w_hh, b, w_out, b_out):
    h = h0
    for t in range(x_tmajor.shape[0]):
        h = jnp.tanh(x_tmajor[t] @ w_ih + h @ w_hh + b)
    return h @ w_out + b_out


def make_batch():
    """One-hot inputs exactly as in the PyTorch tutorial."""
    inputs = []
    for sen in SENTENCES:
        words = sen.split()
        idxs = [WORD_DICT[w] for w in words[:-1]]
        one_hot = jnp.eye(N_CLASS, dtype=jnp.float32)[jnp.array(idxs)]
        inputs.append(one_hot)                  # [seq_len, n_class]
    return jnp.stack(inputs, axis=0)            # [batch, seq_len, n_class]


if __name__ == "__main__":
    key = jax.random.PRNGKey(0)
    k1, k2, k3, k4, k5, k6 = jax.random.split(key, 6)

    # Deterministic parameter init, mimicking PyTorch's U(-1/sqrt(H), 1/sqrt(H)).
    bound_rnn = 1.0 / jnp.sqrt(jnp.float32(N_HIDDEN))
    w_ih = jax.random.uniform(k1, (N_CLASS, N_HIDDEN), jnp.float32,
                              -bound_rnn, bound_rnn)      # = W_ih^T
    w_hh = jax.random.uniform(k2, (N_HIDDEN, N_HIDDEN), jnp.float32,
                              -bound_rnn, bound_rnn)      # = W_hh^T
    b_ih = jax.random.uniform(k3, (1, N_HIDDEN), jnp.float32,
                              -bound_rnn, bound_rnn)
    b_hh = jax.random.uniform(k4, (1, N_HIDDEN), jnp.float32,
                              -bound_rnn, bound_rnn)
    b = b_ih + b_hh                                       # combined RNN bias

    bound_lin = 1.0 / jnp.sqrt(jnp.float32(N_HIDDEN))
    w_out = jax.random.uniform(k5, (N_HIDDEN, N_CLASS), jnp.float32,
                               -bound_lin, bound_lin)     # = W^T
    b_out = jax.random.uniform(k6, (1, N_CLASS), jnp.float32,
                               -bound_lin, bound_lin)

    # Inputs: X [batch, seq_len, n_class]; hidden h0 zeros (as in tutorial),
    # squeezed from PyTorch's [1, batch, n_hidden] to [batch, n_hidden].
    x = make_batch()                              # [3, 2, 7]
    x_tmajor = jnp.transpose(x, (1, 0, 2))        # X.transpose(0,1) -> [2, 3, 7]
    h0 = jnp.zeros((BATCH, N_HIDDEN), jnp.float32)

    out = textrnn_forward(x_tmajor, h0, w_ih, w_hh, b, w_out, b_out)
    out = jax.block_until_ready(out)

    ref = _reference_forward(x_tmajor, h0, w_ih, w_hh, b, w_out, b_out)
    assert out.shape == (BATCH, N_CLASS)
    assert jnp.allclose(out, ref, atol=1e-5, rtol=1e-5)

    print("KERNEL_OK")
</pallas_src>

<mosaic_0001>
module attributes {stable_mosaic.version = 11 : i64} {
  func.func @_textrnn_kernel(%arg0: memref<24x128xf32, #tpu.memory_space<vmem>>, %arg1: memref<400x128xf32, #tpu.memory_space<vmem>>, %arg2: memref<8x128xf32, #tpu.memory_space<vmem>>) attributes {dimension_semantics = [], scalar_prefetch = 0 : i64, scratch_operands = 0 : i64, tpu.core_type = #tpu.core_type<tc>} {
    %c0 = arith.constant 0 : index
    %c0_0 = arith.constant 0 : index
    %0 = vector.load %arg1[%c0, %c0_0] : memref<400x128xf32, #tpu.memory_space<vmem>>, vector<128x128xf32>
    %c128 = arith.constant 128 : index
    %c0_1 = arith.constant 0 : index
    %1 = vector.load %arg1[%c128, %c0_1] : memref<400x128xf32, #tpu.memory_space<vmem>>, vector<128x128xf32>
    %c256 = arith.constant 256 : index
    %c0_2 = arith.constant 0 : index
    %2 = vector.load %arg1[%c256, %c0_2] : memref<400x128xf32, #tpu.memory_space<vmem>>, vector<128x128xf32>
    %c384 = arith.constant 384 : index
    %c0_3 = arith.constant 0 : index
    %3 = vector.load %arg1[%c384, %c0_3] : memref<400x128xf32, #tpu.memory_space<vmem>>, vector<1x128xf32>
    %c392 = arith.constant 392 : index
    %c0_4 = arith.constant 0 : index
    %4 = vector.load %arg1[%c392, %c0_4] : memref<400x128xf32, #tpu.memory_space<vmem>>, vector<1x128xf32>
    %c0_5 = arith.constant 0 : index
    %c0_6 = arith.constant 0 : index
    %5 = vector.load %arg0[%c0_5, %c0_6] : memref<24x128xf32, #tpu.memory_space<vmem>>, vector<16x128xf32>
    %c16 = arith.constant 16 : index
    %c0_7 = arith.constant 0 : index
    %6 = vector.load %arg0[%c16, %c0_7] : memref<24x128xf32, #tpu.memory_space<vmem>>, vector<8x128xf32>
    %cst = arith.constant dense<0.000000e+00> : vector<16x128xf32>
    %7 = tpu.matmul %5, %0, %cst {dimension_numbers = #tpu.dot_dimension_numbers<[1], [0], [0], [1], [0, 0, 1, 1], [], []>} : vector<16x128xf32>, vector<128x128xf32>, vector<16x128xf32> -> vector<16x128xf32>
    %8 = vector.broadcast %3 : vector<1x128xf32> to vector<16x128xf32>
    %9 = arith.addf %7, %8 : vector<16x128xf32>
    %10 = vector.extract_strided_slice %9 {offsets = [0, 0], sizes = [8, 128], strides = [1, 1]} : vector<16x128xf32> to vector<8x128xf32>
    %cst_8 = arith.constant dense<0.000000e+00> : vector<8x128xf32>
    %11 = tpu.matmul %6, %1, %cst_8 {dimension_numbers = #tpu.dot_dimension_numbers<[1], [0], [0], [1], [0, 0, 1, 1], [], []>} : vector<8x128xf32>, vector<128x128xf32>, vector<8x128xf32> -> vector<8x128xf32>
    %12 = arith.addf %10, %11 : vector<8x128xf32>
    %13 = math.tanh %12 : vector<8x128xf32>
    %14 = vector.extract_strided_slice %9 {offsets = [8, 0], sizes = [8, 128], strides = [1, 1]} : vector<16x128xf32> to vector<8x128xf32>
    %cst_9 = arith.constant dense<0.000000e+00> : vector<8x128xf32>
    %15 = tpu.matmul %13, %1, %cst_9 {dimension_numbers = #tpu.dot_dimension_numbers<[1], [0], [0], [1], [0, 0, 1, 1], [], []>} : vector<8x128xf32>, vector<128x128xf32>, vector<8x128xf32> -> vector<8x128xf32>
    %16 = arith.addf %14, %15 : vector<8x128xf32>
    %17 = math.tanh %16 : vector<8x128xf32>
    %cst_10 = arith.constant dense<0.000000e+00> : vector<8x128xf32>
    %18 = tpu.matmul %17, %2, %cst_10 {dimension_numbers = #tpu.dot_dimension_numbers<[1], [0], [0], [1], [0, 0, 1, 1], [], []>} : vector<8x128xf32>, vector<128x128xf32>, vector<8x128xf32> -> vector<8x128xf32>
    %19 = vector.broadcast %4 : vector<1x128xf32> to vector<8x128xf32>
    %20 = arith.addf %18, %19 : vector<8x128xf32>
    %c0_11 = arith.constant 0 : index
    %c0_12 = arith.constant 0 : index
    %21 = vector.load %arg2[%c0_11, %c0_12] : memref<8x128xf32, #tpu.memory_space<vmem>>, vector<8x128xf32>
    tpu.vector_store %arg2[%c0_11, %c0_12], %20 {strides = array<i32>} : memref<8x128xf32, #tpu.memory_space<vmem>>, vector<8x128xf32>,
    return
  }
}

</mosaic_0001>

<llo_original>
// kernel: tpu_custom_call.1
$region0: #{tpu_custom_call.1}
  #allocation0 [shape = 'u32[]', space=smem, size = 0x4, offset = 0x4, fixed_abs, tag = 'smem constant byte address 0x4 - core index']
  #allocation1 [shape = 'u32[144,128]{1,0:T(1,128)}', space=vmem, size = 0x12000, scoped, tag = 'internal scratch']
  %s0 = inlined_call_operand.hbm [shape: f32[24,128], index: 0, kind: input, shape index: {}]
  %s1 = inlined_call_operand.hbm [shape: f32[400,128], index: 1, kind: input, shape index: {}]
  %s2 = inlined_call_operand.hbm [shape: f32[8,128], index: 2, kind: output, shape index: {}]
  %s3 = sld [smem:[#allocation0]]
  $region26: #{tpu_custom_call.1} parent=0
    _
  %s5 = ssub.s32 1, %s3
  %s6 = scalar_select 0, %s5, %s3
  $region1: #{tpu_custom_call.1} parent=0
    #allocation2 [shape = 'u8[12288]{0}', space=vmem, size = 0x3000, scoped, tag = 'input window, operand 0, single buffered']
    #allocation3 [shape = 's32[1]{0}', space=sflag, size = 0x4, scoped, tag = 'scoped memory for tpu_custom_call.1']
    #allocation4 [shape = 's32[1]{0}', space=sflag, size = 0x4, scoped, tag = 'scoped memory for tpu_custom_call.1']
    #allocation5 [shape = 'u8[204800]{0}', space=vmem, size = 0x32000, scoped, tag = 'input window, operand 1, single buffered']
    #allocation6 [shape = 's32[1]{0}', space=sflag, size = 0x4, scoped, tag = 'scoped memory for tpu_custom_call.1']
    #allocation7 [shape = 'u8[4096]{0}', space=vmem, size = 0x1000, scoped, tag = 'output window, operand 0, single buffered']
    %7 = vsyncpa [#allocation3], 0
    %8 = vsyncpa [#allocation6], 0
    %9 = vsyncpa [#allocation4], 0
    // Predicated region
    $region2: #{tpu_custom_call.1} parent=1 // pred_check
      _
    $region3: #{tpu_custom_call.1} parent=1 // pred_check_branch
      %11 = sbr.rel (0) target = $region5
    $region4: #{tpu_custom_call.1} parent=1 // pred_region
      %s13 = ssub.s32 384, 384
      %14 = vsyncadd [#allocation3], %s13
      %s15 = sshll.u32 [#allocation2], 4
      %s16 = int_to_ptr.vmem [resolvable:$true] %s15
      %21 = dma.hbm_to_vmem [thread:$0]  %s0, 384, %s16, [#allocation3], 128, 128, 8
    $region5: #{tpu_custom_call.1} parent=1 // pred_fallthru
      _
    // Predicated region
    $region6: #{tpu_custom_call.1} parent=1 // pred_check
      _
    $region7: #{tpu_custom_call.1} parent=1 // pred_check_branch
      %23 = sbr.rel (0) target = $region9
    $region8: #{tpu_custom_call.1} parent=1 // pred_region
      %s25 = ssub.s32 6400, 6400
      %26 = vsyncadd [#allocation6], %s25
      %s27 = sshll.u32 [#allocation5], 4
      %s28 = int_to_ptr.vmem [resolvable:$true] %s27
      %33 = dma.hbm_to_vmem [thread:$0]  %s1, 6400, %s28, [#allocation6], 128, 128, 8
    $region9: #{tpu_custom_call.1} parent=1 // pred_fallthru
      _
    // Predicated region
    $region10: #{tpu_custom_call.1} parent=1 // pred_check
      _
    $region11: #{tpu_custom_call.1} parent=1 // pred_check_branch
      %35 = sbr.rel (0) target = $region13
    $region12: #{tpu_custom_call.1} parent=1 // pred_region
      %36 = dma.done [#allocation3], 384
    $region13: #{tpu_custom_call.1} parent=1 // pred_fallthru
      _
    // Predicated region
    $region14: #{tpu_custom_call.1} parent=1 // pred_check
      _
    $region15: #{tpu_custom_call.1} parent=1 // pred_check_branch
      %38 = sbr.rel (0) target = $region17
    $region16: #{tpu_custom_call.1} parent=1 // pred_region
      %39 = dma.done [#allocation6], 6400
    $region17: #{tpu_custom_call.1} parent=1 // pred_fallthru
      _
    %v40 = vld [vmem:[#allocation5] sm:$0xff]
    %v41 = vld [vmem:[#allocation5 + $0x8] sm:$0xff]
    %v42 = vld [vmem:[#allocation5 + $0x10] sm:$0xff]
    %v43 = vld [vmem:[#allocation5 + $0x18] sm:$0xff]
    %v44 = vld [vmem:[#allocation5 + $0x20] sm:$0xff]
    %v45 = vld [vmem:[#allocation5 + $0x28] sm:$0xff]
    %v46 = vld [vmem:[#allocation5 + $0x30] sm:$0xff]
    %v47 = vld [vmem:[#allocation5 + $0x38] sm:$0xff]
    %v48 = vld [vmem:[#allocation5 + $0x40] sm:$0xff]
    %v49 = vld [vmem:[#allocation5 + $0x48] sm:$0xff]
    %v50 = vld [vmem:[#allocation5 + $0x50] sm:$0xff]
    %v51 = vld [vmem:[#allocation5 + $0x58] sm:$0xff]
    %v52 = vld [vmem:[#allocation5 + $0x60] sm:$0xff]
    %v53 = vld [vmem:[#allocation5 + $0x68] sm:$0xff]
    %v54 = vld [vmem:[#allocation5 + $0x70] sm:$0xff]
    %v55 = vld [vmem:[#allocation5 + $0x78] sm:$0xff]
    %v56 = vld [vmem:[#allocation5 + $0x80] sm:$0xff]
    %v57 = vld [vmem:[#allocation5 + $0x88] sm:$0xff]
    %v58 = vld [vmem:[#allocation5 + $0x90] sm:$0xff]
    %v59 = vld [vmem:[#allocation5 + $0x98] sm:$0xff]
    %v60 = vld [vmem:[#allocation5 + $0xa0] sm:$0xff]
    %v61 = vld [vmem:[#allocation5 + $0xa8] sm:$0xff]
    %v62 = vld [vmem:[#allocation5 + $0xb0] sm:$0xff]
    %v63 = vld [vmem:[#allocation5 + $0xb8] sm:$0xff]
    %v64 = vld [vmem:[#allocation5 + $0xc0] sm:$0xff]
    %v65 = vld [vmem:[#allocation5 + $0xc8] sm:$0xff]
    %v66 = vld [vmem:[#allocation5 + $0xd0] sm:$0xff]
    %v67 = vld [vmem:[#allocation5 + $0xd8] sm:$0xff]
    %v68 = vld [vmem:[#allocation5 + $0xe0] sm:$0xff]
    %v69 = vld [vmem:[#allocation5 + $0xe8] sm:$0xff]
    %v70 = vld [vmem:[#allocation5 + $0xf0] sm:$0xff]
    %v71 = vld [vmem:[#allocation5 + $0xf8] sm:$0xff]
    %v72 = vld [vmem:[#allocation5 + $0x100] sm:$0xff]
    %v73 = vld [vmem:[#allocation5 + $0x108] sm:$0xff]
    %v74 = vld [vmem:[#allocation5 + $0x110] sm:$0xff]
    %v75 = vld [vmem:[#allocation5 + $0x118] sm:$0xff]
    %v76 = vld [vmem:[#allocation5 + $0x120] sm:$0xff]
    %v77 = vld [vmem:[#allocation5 + $0x128] sm:$0xff]
    %v78 = vld [vmem:[#allocation5 + $0x130] sm:$0xff]
    %v79 = vld [vmem:[#allocation5 + $0x138] sm:$0xff]
    %v80 = vld [vmem:[#allocation5 + $0x140] sm:$0xff]
    %v81 = vld [vmem:[#allocation5 + $0x148] sm:$0xff]
    %v82 = vld [vmem:[#allocation5 + $0x150] sm:$0xff]
    %v83 = vld [vmem:[#allocation5 + $0x158] sm:$0xff]
    %v84 = vld [vmem:[#allocation5 + $0x160] sm:$0xff]
    %v85 = vld [vmem:[#allocation5 + $0x168] sm:$0xff]
    %v86 = vld [vmem:[#allocation5 + $0x170] sm:$0xff]
    %v87 = vld [vmem:[#allocation5 + $0x178] sm:$0xff]
    %v88 = vld [vmem:[#allocation5 + $0x180] sm:$0x1]
    %v89 = vld [vmem:[#allocation5 + $0x188] sm:$0x1]
    %v90 = vld [vmem:[#allocation2] sm:$0xff]
    %v91 = vld [vmem:[#allocation2 + $0x8] sm:$0xff]
    %v92 = vld [vmem:[#allocation2 + $0x10] sm:$0xff]
    %v93 = vlaneseq
    %v94 = vshrl.u32 %v93, 7
    %v95 = vsub.s32 0, %v94
    %v96 = vrot.slane %v88, %v95
    %97 = vmatprep.subr.mxu0 0.0
    %98 = vmatpush1.msra.mxu0 %v40
    %99 = vmatprep.subr.mxu0 0.0
    %100 = vmatpush1.msra.mxu0 %v41
    %101 = vmatprep.subr.mxu0 0.0
    %102 = vmatpush1.msra.mxu0 %v42
    %103 = vmatprep.subr.mxu0 0.0
    %104 = vmatpush1.msra.mxu0 %v43
    %105 = vmatprep.subr.mxu0 0.0
    %106 = vmatpush1.msra.mxu0 %v44
    %107 = vmatprep.subr.mxu0 0.0
    %108 = vmatpush1.msra.mxu0 %v45
    %109 = vmatprep.subr.mxu0 0.0
    %110 = vmatpush1.msra.mxu0 %v46
    %111 = vmatprep.subr.mxu0 0.0
    %112 = vmatpush1.msra.mxu0 %v47
    %113 = vmatprep.subr.mxu0 0.0
    %114 = vmatpush1.msra.mxu0 %v48
    %115 = vmatprep.subr.mxu0 0.0
    %116 = vmatpush1.msra.mxu0 %v49
    %117 = vmatprep.subr.mxu0 0.0
    %118 = vmatpush1.msra.mxu0 %v50
    %119 = vmatprep.subr.mxu0 0.0
    %120 = vmatpush1.msra.mxu0 %v51
    %121 = vmatprep.subr.mxu0 0.0
    %122 = vmatpush1.msra.mxu0 %v52
    %123 = vmatprep.subr.mxu0 0.0
    %124 = vmatpush1.msra.mxu0 %v53
    %125 = vmatprep.subr.mxu0 0.0
    %126 = vmatpush1.msra.mxu0 %v54
    %127 = vmatprep.subr.mxu0 0.0
    %128 = vmatpush1.msra.mxu0 %v55
    %129 = vmatprep.subr.mxu0 0.0
    %130 = vmatpush1.msra.mxu0 0.0
    %131 = vmatprep.subr.mxu0 0.0
    %132 = vmatpush1.msra.mxu0 0.0
    %133 = vmatprep.subr.mxu0 0.0
    %134 = vmatpush1.msra.mxu0 0.0
    %135 = vmatprep.subr.mxu0 0.0
    %136 = vmatpush1.msra.mxu0 0.0
    %137 = vmatprep.subr.mxu0 0.0
    %138 = vmatpush1.msra.mxu0 0.0
    %139 = vmatprep.subr.mxu0 0.0
    %140 = vmatpush1.msra.mxu0 0.0
    %141 = vmatprep.subr.mxu0 0.0
    %142 = vmatpush1.msra.mxu0 0.0
    %143 = vmatprep.subr.mxu0 0.0
    %144 = vmatpush1.msra.mxu0 0.0
    %145 = vmatprep.subr.mxu0 0.0
    %146 = vmatpush1.msra.mxu0 0.0
    %147 = vmatprep.subr.mxu0 0.0
    %148 = vmatpush1.msra.mxu0 0.0
    %149 = vmatprep.subr.mxu0 0.0
    %150 = vmatpush1.msra.mxu0 0.0
    %151 = vmatprep.subr.mxu0 0.0
    %152 = vmatpush1.msra.mxu0 0.0
    %153 = vmatprep.subr.mxu0 0.0
    %154 = vmatpush1.msra.mxu0 0.0
    %155 = vmatprep.subr.mxu0 0.0
    %156 = vmatpush1.msra.mxu0 0.0
    %157 = vmatprep.subr.mxu0 0.0
    %158 = vmatpush1.msra.mxu0 0.0
    %159 = vmatprep.subr.mxu0 0.0
    %160 = vmatpush1.msra.mxu0 0.0
    %161 = vmatprep.mubr.f32.mxu0 0.0
    %162 = vmatmul.mubr.f32.gmra.mrb[0].mxu0 %v90
    %v163 = vpop.f32.mrb[0].mxu0
    %v164 = vadd.f32 %v96, %v163
    %v165 = vpop.f32.mrb[0].mxu0
    %166 = vmatprep.mubr.f32.mxu0 0.0
    %167 = vmatmul.mubr.f32.gmra.mrb[0].mxu0 %v91
    %v168 = vpop.f32.mrb[0].mxu0
    %v169 = vadd.f32 %v96, %v168
    %v170 = vpop.f32.mrb[0].mxu0
    %171 = vdwg.mxu0
    %172 = vmatprep.subr.mxu0 0.0
    %173 = vmatpush1.msra.mxu0 %v56
    %174 = vmatprep.subr.mxu0 0.0
    %175 = vmatpush1.msra.mxu0 %v57
    %176 = vmatprep.subr.mxu0 0.0
    %177 = vmatpush1.msra.mxu0 %v58
    %178 = vmatprep.subr.mxu0 0.0
    %179 = vmatpush1.msra.mxu0 %v59
    %180 = vmatprep.subr.mxu0 0.0
    %181 = vmatpush1.msra.mxu0 %v60
    %182 = vmatprep.subr.mxu0 0.0
    %183 = vmatpush1.msra.mxu0 %v61
    %184 = vmatprep.subr.mxu0 0.0
    %185 = vmatpush1.msra.mxu0 %v62
    %186 = vmatprep.subr.mxu0 0.0
    %187 = vmatpush1.msra.mxu0 %v63
    %188 = vmatprep.subr.mxu0 0.0
    %189 = vmatpush1.msra.mxu0 %v64
    %190 = vmatprep.subr.mxu0 0.0
    %191 = vmatpush1.msra.mxu0 %v65
    %192 = vmatprep.subr.mxu0 0.0
    %193 = vmatpush1.msra.mxu0 %v66
    %194 = vmatprep.subr.mxu0 0.0
    %195 = vmatpush1.msra.mxu0 %v67
    %196 = vmatprep.subr.mxu0 0.0
    %197 = vmatpush1.msra.mxu0 %v68
    %198 = vmatprep.subr.mxu0 0.0
    %199 = vmatpush1.msra.mxu0 %v69
    %200 = vmatprep.subr.mxu0 0.0
    %201 = vmatpush1.msra.mxu0 %v70
    %202 = vmatprep.subr.mxu0 0.0
    %203 = vmatpush1.msra.mxu0 %v71
    %204 = vmatprep.subr.mxu0 0.0
    %205 = vmatpush1.msra.mxu0 0.0
    %206 = vmatprep.subr.mxu0 0.0
    %207 = vmatpush1.msra.mxu0 0.0
    %208 = vmatprep.subr.mxu0 0.0
    %209 = vmatpush1.msra.mxu0 0.0
    %210 = vmatprep.subr.mxu0 0.0
    %211 = vmatpush1.msra.mxu0 0.0
    %212 = vmatprep.subr.mxu0 0.0
    %213 = vmatpush1.msra.mxu0 0.0
    %214 = vmatprep.subr.mxu0 0.0
    %215 = vmatpush1.msra.mxu0 0.0
    %216 = vmatprep.subr.mxu0 0.0
    %217 = vmatpush1.msra.mxu0 0.0
    %218 = vmatprep.subr.mxu0 0.0
    %219 = vmatpush1.msra.mxu0 0.0
    %220 = vmatprep.subr.mxu0 0.0
    %221 = vmatpush1.msra.mxu0 0.0
    %222 = vmatprep.subr.mxu0 0.0
    %223 = vmatpush1.msra.mxu0 0.0
    %224 = vmatprep.subr.mxu0 0.0
    %225 = vmatpush1.msra.mxu0 0.0
    %226 = vmatprep.subr.mxu0 0.0
    %227 = vmatpush1.msra.mxu0 0.0
    %228 = vmatprep.subr.mxu0 0.0
    %229 = vmatpush1.msra.mxu0 0.0
    %230 = vmatprep.subr.mxu0 0.0
    %231 = vmatpush1.msra.mxu0 0.0
    %232 = vmatprep.subr.mxu0 0.0
    %233 = vmatpush1.msra.mxu0 0.0
    %234 = vmatprep.subr.mxu0 0.0
    %235 = vmatpush1.msra.mxu0 0.0
    %236 = vmatprep.mubr.f32.mxu0 0.0
    %237 = vmatmul.mubr.f32.gmra.mrb[0].mxu0 %v92
    %v238 = vpop.f32.mrb[0].mxu0
    %v239 = vadd.f32 0.0, %v238
    %v240 = vpop.f32.mrb[0].mxu0
    %241 = vdwg.mxu0
    %v242 = vadd.f32 %v164, %v239
    %v243 = vtanh.pop %v242
    %244 = vmatprep.subr.mxu0 0.0
    %245 = vmatpush1.msra.mxu0 %v56
    %246 = vmatprep.subr.mxu0 0.0
    %247 = vmatpush1.msra.mxu0 %v57
    %248 = vmatprep.subr.mxu0 0.0
    %249 = vmatpush1.msra.mxu0 %v58
    %250 = vmatprep.subr.mxu0 0.0
    %251 = vmatpush1.msra.mxu0 %v59
    %252 = vmatprep.subr.mxu0 0.0
    %253 = vmatpush1.msra.mxu0 %v60
    %254 = vmatprep.subr.mxu0 0.0
    %255 = vmatpush1.msra.mxu0 %v61
    %256 = vmatprep.subr.mxu0 0.0
    %257 = vmatpush1.msra.mxu0 %v62
    %258 = vmatprep.subr.mxu0 0.0
    %259 = vmatpush1.msra.mxu0 %v63
    %260 = vmatprep.subr.mxu0 0.0
    %261 = vmatpush1.msra.mxu0 %v64
    %262 = vmatprep.subr.mxu0 0.0
    %263 = vmatpush1.msra.mxu0 %v65
    %264 = vmatprep.subr.mxu0 0.0
    %265 = vmatpush1.msra.mxu0 %v66
    %266 = vmatprep.subr.mxu0 0.0
    %267 = vmatpush1.msra.mxu0 %v67
    %268 = vmatprep.subr.mxu0 0.0
    %269 = vmatpush1.msra.mxu0 %v68
    %270 = vmatprep.subr.mxu0 0.0
    %271 = vmatpush1.msra.mxu0 %v69
    %272 = vmatprep.subr.mxu0 0.0
    %273 = vmatpush1.msra.mxu0 %v70
    %274 = vmatprep.subr.mxu0 0.0
    %275 = vmatpush1.msra.mxu0 %v71
    %276 = vmatprep.subr.mxu0 0.0
    %277 = vmatpush1.msra.mxu0 0.0
    %278 = vmatprep.subr.mxu0 0.0
    %279 = vmatpush1.msra.mxu0 0.0
    %280 = vmatprep.subr.mxu0 0.0
    %281 = vmatpush1.msra.mxu0 0.0
    %282 = vmatprep.subr.mxu0 0.0
    %283 = vmatpush1.msra.mxu0 0.0
    %284 = vmatprep.subr.mxu0 0.0
    %285 = vmatpush1.msra.mxu0 0.0
    %286 = vmatprep.subr.mxu0 0.0
    %287 = vmatpush1.msra.mxu0 0.0
    %288 = vmatprep.subr.mxu0 0.0
    %289 = vmatpush1.msra.mxu0 0.0
    %290 = vmatprep.subr.mxu0 0.0
    %291 = vmatpush1.msra.mxu0 0.0
    %292 = vmatprep.subr.mxu0 0.0
    %293 = vmatpush1.msra.mxu0 0.0
    %294 = vmatprep.subr.mxu0 0.0
    %295 = vmatpush1.msra.mxu0 0.0
    %296 = vmatprep.subr.mxu0 0.0
    %297 = vmatpush1.msra.mxu0 0.0
    %298 = vmatprep.subr.mxu0 0.0
    %299 = vmatpush1.msra.mxu0 0.0
    %300 = vmatprep.subr.mxu0 0.0
    %301 = vmatpush1.msra.mxu0 0.0
    %302 = vmatprep.subr.mxu0 0.0
    %303 = vmatpush1.msra.mxu0 0.0
    %304 = vmatprep.subr.mxu0 0.0
    %305 = vmatpush1.msra.mxu0 0.0
    %306 = vmatprep.subr.mxu0 0.0
    %307 = vmatpush1.msra.mxu0 0.0
    %308 = vmatprep.mubr.f32.mxu0 0.0
    %309 = vmatmul.mubr.f32.gmra.mrb[0].mxu0 %v243
    %v310 = vpop.f32.mrb[0].mxu0
    %v311 = vadd.f32 0.0, %v310
    %v312 = vpop.f32.mrb[0].mxu0
    %313 = vdwg.mxu0
    %v314 = vadd.f32 %v169, %v311
    %v315 = vtanh.pop %v314
    %v316 = vlaneseq
    %v317 = vshrl.u32 %v316, 7
    %v318 = vsub.s32 0, %v317
    %v319 = vrot.slane %v89, %v318
    %320 = vmatprep.subr.mxu0 0.0
    %321 = vmatpush1.msra.mxu0 %v72
    %322 = vmatprep.subr.mxu0 0.0
    %323 = vmatpush1.msra.mxu0 %v73
    %324 = vmatprep.subr.mxu0 0.0
    %325 = vmatpush1.msra.mxu0 %v74
    %326 = vmatprep.subr.mxu0 0.0
    %327 = vmatpush1.msra.mxu0 %v75
    %328 = vmatprep.subr.mxu0 0.0
    %329 = vmatpush1.msra.mxu0 %v76
    %330 = vmatprep.subr.mxu0 0.0
    %331 = vmatpush1.msra.mxu0 %v77
    %332 = vmatprep.subr.mxu0 0.0
    %333 = vmatpush1.msra.mxu0 %v78
    %334 = vmatprep.subr.mxu0 0.0
    %335 = vmatpush1.msra.mxu0 %v79
    %336 = vmatprep.subr.mxu0 0.0
    %337 = vmatpush1.msra.mxu0 %v80
    %338 = vmatprep.subr.mxu0 0.0
    %339 = vmatpush1.msra.mxu0 %v81
    %340 = vmatprep.subr.mxu0 0.0
    %341 = vmatpush1.msra.mxu0 %v82
    %342 = vmatprep.subr.mxu0 0.0
    %343 = vmatpush1.msra.mxu0 %v83
    %344 = vmatprep.subr.mxu0 0.0
    %345 = vmatpush1.msra.mxu0 %v84
    %346 = vmatprep.subr.mxu0 0.0
    %347 = vmatpush1.msra.mxu0 %v85
    %348 = vmatprep.subr.mxu0 0.0
    %349 = vmatpush1.msra.mxu0 %v86
    %350 = vmatprep.subr.mxu0 0.0
    %351 = vmatpush1.msra.mxu0 %v87
    %352 = vmatprep.subr.mxu0 0.0
    %353 = vmatpush1.msra.mxu0 0.0
    %354 = vmatprep.subr.mxu0 0.0
    %355 = vmatpush1.msra.mxu0 0.0
    %356 = vmatprep.subr.mxu0 0.0
    %357 = vmatpush1.msra.mxu0 0.0
    %358 = vmatprep.subr.mxu0 0.0
    %359 = vmatpush1.msra.mxu0 0.0
    %360 = vmatprep.subr.mxu0 0.0
    %361 = vmatpush1.msra.mxu0 0.0
    %362 = vmatprep.subr.mxu0 0.0
    %363 = vmatpush1.msra.mxu0 0.0
    %364 = vmatprep.subr.mxu0 0.0
    %365 = vmatpush1.msra.mxu0 0.0
    %366 = vmatprep.subr.mxu0 0.0
    %367 = vmatpush1.msra.mxu0 0.0
    %368 = vmatprep.subr.mxu0 0.0
    %369 = vmatpush1.msra.mxu0 0.0
    %370 = vmatprep.subr.mxu0 0.0
    %371 = vmatpush1.msra.mxu0 0.0
    %372 = vmatprep.subr.mxu0 0.0
    %373 = vmatpush1.msra.mxu0 0.0
    %374 = vmatprep.subr.mxu0 0.0
    %375 = vmatpush1.msra.mxu0 0.0
    %376 = vmatprep.subr.mxu0 0.0
    %377 = vmatpush1.msra.mxu0 0.0
    %378 = vmatprep.subr.mxu0 0.0
    %379 = vmatpush1.msra.mxu0 0.0
    %380 = vmatprep.subr.mxu0 0.0
    %381 = vmatpush1.msra.mxu0 0.0
    %382 = vmatprep.subr.mxu0 0.0
    %383 = vmatpush1.msra.mxu0 0.0
    %384 = vmatprep.mubr.f32.mxu0 0.0
    %385 = vmatmul.mubr.f32.gmra.mrb[0].mxu0 %v315
    %v386 = vpop.f32.mrb[0].mxu0
    %v387 = vadd.f32 %v319, %v386
    %v388 = vpop.f32.mrb[0].mxu0
    %389 = vdwg.mxu0
    %390 = vst [vmem:[#allocation7] sm:$0xff] %v387
    // Predicated region
    $region18: #{tpu_custom_call.1} parent=1 // pred_check
      _
    $region19: #{tpu_custom_call.1} parent=1 // pred_check_branch
      %392 = sbr.rel (0) target = $region21
    $region20: #{tpu_custom_call.1} parent=1 // pred_region
      %s394 = ssub.s32 128, 128
      %395 = vsyncadd [#allocation4], %s394
      %s397 = sshll.u32 [#allocation7], 4
      %s398 = int_to_ptr.vmem [resolvable:$true] %s397
      %400 = dma.vmem_to_hbm [thread:$0]  %s398, 128, %s2, [#allocation4]
    $region21: #{tpu_custom_call.1} parent=1 // pred_fallthru
      _
    // Predicated region
    $region22: #{tpu_custom_call.1} parent=1 // pred_check
      _
    $region23: #{tpu_custom_call.1} parent=1 // pred_check_branch
      %402 = sbr.rel (0) target = $region25
    $region24: #{tpu_custom_call.1} parent=1 // pred_region
      %403 = dma.done [#allocation4], 128
    $region25: #{tpu_custom_call.1} parent=1 // pred_fallthru
      _
    %404 = vsyncpa [#allocation3], 1
    %405 = vsyncpa [#allocation6], 1
    %406 = vsyncpa [#allocation4], 1

</llo_original>
